<compile_context>
chip_gen: v6e
topology: v6e:2x2x1
jax: 0.10.0
libtpu: 0.0.40
codegen_flags: <defaults>
</compile_context>

<pallas_src>
import functools

import jax
import jax.numpy as jnp
from jax.experimental import pallas as pl
from jax.experimental.pallas import tpu as pltpu

BN_EPS = 1e-5
VMEM_LIMIT_BYTES = 32 * 1024 * 1024   # safe on v5e/v6e (128 MiB) and v7x (64 MiB)


# --------------------------------------------------------------------------- #
# Pass 1: tiled spatial-sum reduction  (B, C, S) -> (B, C)
# --------------------------------------------------------------------------- #
def _sum_kernel(x_ref, sums_ref):
    @pl.when(pl.program_id(0) == 0)
    def _():
        sums_ref[...] = jnp.zeros_like(sums_ref)
    # cross-lane reduce of the current (B, C, TILE_S) tile, accumulate in the
    # VMEM-resident (B, C) output block.
    sums_ref[...] += jnp.sum(x_ref[...], axis=-1)


# --------------------------------------------------------------------------- #
# Pass 2: excite MLP on the (B, C) pooled tensor -> sigmoid gate (B, C)
# --------------------------------------------------------------------------- #
def _gate_kernel(sums_ref, w1_ref, b1_ref, g1_ref, be1_ref,
                 w2_ref, b2_ref, g2_ref, be2_ref, gate_ref, *, inv_s):
    # ---- squeeze: AdaptiveAvgPool3d(1) == sum / S ----
    y = sums_ref[...] * inv_s                                       # (B, C)

    # ---- fc1: Linear(C, C//r) ----
    h = jnp.dot(y, w1_ref[...], preferred_element_type=jnp.float32) + b1_ref[...]

    # ---- BN1 (train-mode batch stats, biased var) ----
    mu1 = jnp.mean(h, axis=0, keepdims=True)
    var1 = jnp.mean((h - mu1) * (h - mu1), axis=0, keepdims=True)
    h = (h - mu1) * jax.lax.rsqrt(var1 + BN_EPS) * g1_ref[...] + be1_ref[...]

    # ---- ELU (alpha = 1); expm1 is more accurate near 0 ----
    h = jnp.where(h > 0, h, jnp.expm1(h))

    # ---- fc2: Linear(C//r, C) ----
    z = jnp.dot(h, w2_ref[...], preferred_element_type=jnp.float32) + b2_ref[...]

    # ---- BN2 ----
    mu2 = jnp.mean(z, axis=0, keepdims=True)
    var2 = jnp.mean((z - mu2) * (z - mu2), axis=0, keepdims=True)
    z = (z - mu2) * jax.lax.rsqrt(var2 + BN_EPS) * g2_ref[...] + be2_ref[...]

    # ---- sigmoid gate ----
    gate_ref[...] = jax.nn.sigmoid(z)                               # (B, C)


# --------------------------------------------------------------------------- #
# Pass 3: streaming channel-wise rescale  out = x * gate
# --------------------------------------------------------------------------- #
def _rescale_kernel(x_ref, gate_ref, o_ref):
    # gate_ref is (B, C, 1); one broadcast-vmul per vreg, lane-dense store.
    o_ref[...] = x_ref[...] * gate_ref[...]


# --------------------------------------------------------------------------- #
# Helpers / wrapper
# --------------------------------------------------------------------------- #
def _full_spec_1d_grid(shape):
    n = len(shape)
    return pl.BlockSpec(shape, lambda i, _n=n: (0,) * _n)


def _choose_tile_s(B, C, S, dtype_bytes=4, vmem_budget_bytes=8 << 20):
    """Pick a 128-aligned spatial tile that keeps the double-buffered
    in+out tiles (~4 live buffers of B*C*TILE_S*dtype_bytes) well under the
    scoped-VMEM budget on every TPU generation (incl. v7x's 64 MiB VMEM)."""
    cap = vmem_budget_bytes // (4 * B * C * dtype_bytes)
    cap = max(128, (cap // 128) * 128)
    s_pad128 = -(-S // 128) * 128
    return min(cap, 1024, s_pad128)


def se_layer_forward(x, params):
    """x: (B, C, D, H, W) float32.  Returns same shape."""
    B, C, D, H, W = x.shape
    S = D * H * W
    x_flat = x.reshape(B, C, S)

    tile_s = _choose_tile_s(B, C, S, dtype_bytes=x.dtype.itemsize)
    s_pad = -(-S // tile_s) * tile_s          # round S up to a multiple of tile_s
    if s_pad != S:
        x_flat = jnp.pad(x_flat, ((0, 0), (0, 0), (0, s_pad - S)))
    num_tiles = s_pad // tile_s

    # ---- pass 1: spatial sums (reduction axis is the grid axis, "arbitrary") ----
    sums = pl.pallas_call(
        _sum_kernel,
        out_shape=jax.ShapeDtypeStruct((B, C), jnp.float32),
        grid=(num_tiles,),
        in_specs=[pl.BlockSpec((B, C, tile_s), lambda s: (0, 0, s))],
        out_specs=pl.BlockSpec((B, C), lambda s: (0, 0)),
        compiler_params=pltpu.CompilerParams(
            dimension_semantics=("arbitrary",),
            vmem_limit_bytes=VMEM_LIMIT_BYTES),
    )(x_flat)

    # ---- pass 2: tiny excite MLP -> gate (B, C) ----
    gate_operands = (sums,) + tuple(params)
    gate = pl.pallas_call(
        functools.partial(_gate_kernel, inv_s=1.0 / float(S)),
        out_shape=jax.ShapeDtypeStruct((B, C), jnp.float32),
        grid=(1,),
        in_specs=[_full_spec_1d_grid(op.shape) for op in gate_operands],
        out_specs=_full_spec_1d_grid((B, C)),
        compiler_params=pltpu.CompilerParams(
            dimension_semantics=("arbitrary",)),
    )(*gate_operands)

    gate3 = gate.reshape(B, C, 1).astype(x.dtype)

    # ---- pass 3: streaming rescale (fully parallel over spatial tiles) ----
    out_flat = pl.pallas_call(
        _rescale_kernel,
        out_shape=jax.ShapeDtypeStruct((B, C, s_pad), x.dtype),
        grid=(num_tiles,),
        in_specs=[pl.BlockSpec((B, C, tile_s), lambda s: (0, 0, s)),
                  pl.BlockSpec((B, C, 1), lambda s: (0, 0, 0))],
        out_specs=pl.BlockSpec((B, C, tile_s), lambda s: (0, 0, s)),
        compiler_params=pltpu.CompilerParams(
            dimension_semantics=("parallel",),
            vmem_limit_bytes=VMEM_LIMIT_BYTES),
    )(x_flat, gate3)

    return out_flat[:, :, :S].reshape(B, C, D, H, W)


def init_se_params(key, channel, reduction=4):
    """Deterministic synthetic parameters matching the PyTorch module shapes.

    Linear weights are stored pre-transposed: (in_features, out_features).
    1-D vectors are stored as (1, N) so they broadcast cleanly on TPU.
    """
    cr = channel // reduction
    k1, k2, k3, k4 = jax.random.split(key, 4)

    bound1 = 1.0 / jnp.sqrt(channel)
    w1 = jax.random.uniform(k1, (channel, cr), jnp.float32, -bound1, bound1)
    b1 = jax.random.uniform(k2, (1, cr), jnp.float32, -bound1, bound1)

    bound2 = 1.0 / jnp.sqrt(cr)
    w2 = jax.random.uniform(k3, (cr, channel), jnp.float32, -bound2, bound2)
    b2 = jax.random.uniform(k4, (1, channel), jnp.float32, -bound2, bound2)

    # BatchNorm affine params: default init weight=1, bias=0.
    g1 = jnp.ones((1, cr), jnp.float32)
    be1 = jnp.zeros((1, cr), jnp.float32)
    g2 = jnp.ones((1, channel), jnp.float32)
    be2 = jnp.zeros((1, channel), jnp.float32)

    return (w1, b1, g1, be1, w2, b2, g2, be2)


if __name__ == "__main__":
    key = jax.random.PRNGKey(0)
    kx, kp = jax.random.split(key)

    B, C, D, H, W = 2, 8, 4, 8, 8          # small 3-D input: (B, C, D, H, W)
    reduction = 4

    x = jax.random.normal(kx, (B, C, D, H, W), dtype=jnp.float32)
    params = init_se_params(kp, C, reduction)

    out = se_layer_forward(x, params)
    out = jax.block_until_ready(out)

    assert out.shape == x.shape and out.dtype == x.dtype
    assert bool(jnp.all(jnp.isfinite(out)))
    print("KERNEL_OK")
</pallas_src>

<mosaic_0001>
module attributes {stable_mosaic.version = 11 : i64} {
  func.func @_sum_kernel(%arg0: i32, %arg1: memref<2x8x256xf32, #tpu.memory_space<vmem>>, %arg2: memref<2x8xf32, #tpu.memory_space<vmem>>) attributes {dimension_semantics = [#tpu.dimension_semantics<arbitrary>], iteration_bounds = array<i64: 1>, scalar_prefetch = 0 : i64, scratch_operands = 0 : i64, tpu.core_type = #tpu.core_type<tc>, window_params = [{transform_indices = @transform_0, window_bounds = array<i64: 2, 8, 256>}, {pipeline_mode = #tpu.pipeline_mode<synchronous>, transform_indices = @transform_1, window_bounds = array<i64: 2, 8>}]} {
    %c0_i32 = arith.constant 0 : i32
    %0 = arith.cmpi eq, %arg0, %c0_i32 : i32
    %1 = arith.extui %0 : i1 to i32
    %c0_i32_0 = arith.constant 0 : i32
    %2 = arith.cmpi ne, %1, %c0_i32_0 : i32
    scf.if %2 {
      %cst_7 = arith.constant 0.000000e+00 : f32
      %8 = vector.broadcast %cst_7 : f32 to vector<2x8xf32>
      %c0_8 = arith.constant 0 : index
      %c0_9 = arith.constant 0 : index
      %9 = vector.load %arg2[%c0_8, %c0_9] : memref<2x8xf32, #tpu.memory_space<vmem>>, vector<2x8xf32>
      tpu.vector_store %arg2[%c0_8, %c0_9], %8 {strides = array<i32>} : memref<2x8xf32, #tpu.memory_space<vmem>>, vector<2x8xf32>,
    } else {
    }
    %c0 = arith.constant 0 : index
    %c0_1 = arith.constant 0 : index
    %3 = vector.load %arg2[%c0, %c0_1] : memref<2x8xf32, #tpu.memory_space<vmem>>, vector<2x8xf32>
    %c0_2 = arith.constant 0 : index
    %c0_3 = arith.constant 0 : index
    %c0_4 = arith.constant 0 : index
    %4 = vector.load %arg1[%c0_2, %c0_3, %c0_4] : memref<2x8x256xf32, #tpu.memory_space<vmem>>, vector<2x8x256xf32>
    %cst = arith.constant dense<0.000000e+00> : vector<2x8xf32>
    %5 = vector.multi_reduction <add>, %4, %cst [2] : vector<2x8x256xf32> to vector<2x8xf32>
    %6 = arith.addf %3, %5 : vector<2x8xf32>
    %c0_5 = arith.constant 0 : index
    %c0_6 = arith.constant 0 : index
    %7 = vector.load %arg2[%c0_5, %c0_6] : memref<2x8xf32, #tpu.memory_space<vmem>>, vector<2x8xf32>
    tpu.vector_store %arg2[%c0_5, %c0_6], %6 {strides = array<i32>} : memref<2x8xf32, #tpu.memory_space<vmem>>, vector<2x8xf32>,
    return
  }
  func.func @transform_0(%arg0: i32) -> (i32, i32, i32) {
    %c0_i32 = arith.constant 0 : i32
    %c0_i32_0 = arith.constant 0 : i32
    %c0_i32_1 = arith.constant 0 : i32
    return %c0_i32, %c0_i32_0, %arg0 : i32, i32, i32
  }
  func.func @transform_1(%arg0: i32) -> (i32, i32) {
    %c0_i32 = arith.constant 0 : i32
    %c0_i32_0 = arith.constant 0 : i32
    %c0_i32_1 = arith.constant 0 : i32
    return %c0_i32, %c0_i32_0 : i32, i32
  }
}

</mosaic_0001>

<llo_original>
// kernel: tpu_custom_call.1
$region0: #{tpu_custom_call.1}
  #allocation0 [shape = 'u32[]', space=smem, size = 0x4, offset = 0x4, fixed_abs, tag = 'smem constant byte address 0x4 - core index']
  #allocation1 [shape = 'u32[144,128]{1,0:T(1,128)}', space=vmem, size = 0x12000, scoped, tag = 'internal scratch']
  %s0 = inlined_call_operand.hbm [shape: f32[2,8,256], index: 0, kind: input, shape index: {}]
  %s1 = inlined_call_operand.hbm [shape: f32[2,8], index: 1, kind: output, shape index: {}]
  %s2 = sld [smem:[#allocation0]]
  $region22: #{tpu_custom_call.1} parent=0
    _
  %s4 = ssub.s32 1, %s2
  %s5 = scalar_select 0, %s4, %s2
  $region1: #{tpu_custom_call.1} parent=0
    #allocation2 [shape = 'u8[16384]{0}', space=vmem, size = 0x4000, scoped, tag = 'input window, operand 0, single buffered']
    #allocation3 [shape = 's32[1]{0}', space=sflag, size = 0x4, scoped, tag = 'scoped memory for tpu_custom_call.1']
    #allocation4 [shape = 's32[1]{0}', space=sflag, size = 0x4, scoped, tag = 'scoped memory for tpu_custom_call.1']
    #allocation5 [shape = 'u8[1024]{0}', space=vmem, size = 0x400, scoped, tag = 'output window, operand 0, single buffered']
    %6 = vsyncpa [#allocation3], 0
    %7 = vsyncpa [#allocation4], 0
    // Predicated region
    $region2: #{tpu_custom_call.1} parent=1 // pred_check
      _
    $region3: #{tpu_custom_call.1} parent=1 // pred_check_branch
      %9 = sbr.rel (0) target = $region5
    $region4: #{tpu_custom_call.1} parent=1 // pred_region
      %s11 = ssub.s32 512, 512
      %12 = vsyncadd [#allocation3], %s11
      %s13 = sshll.u32 [#allocation2], 4
      %s14 = int_to_ptr.vmem [resolvable:$true] %s13
      %19 = dma.hbm_to_vmem [thread:$0]  %s0, 512, %s14, [#allocation3], 256, 256, 16
    $region5: #{tpu_custom_call.1} parent=1 // pred_fallthru
      _
    // Predicated region
    $region6: #{tpu_custom_call.1} parent=1 // pred_check
      _
    $region7: #{tpu_custom_call.1} parent=1 // pred_check_branch
      %21 = sbr.rel (0) target = $region9
    $region8: #{tpu_custom_call.1} parent=1 // pred_region
      %22 = dma.done [#allocation3], 512
    $region9: #{tpu_custom_call.1} parent=1 // pred_fallthru
      _
    %p23 = scmp.eq.s32.totalorder 0, 0
    // Predicated region
    $region10: #{tpu_custom_call.1} parent=1 // pred_check
      %p24 = pneg %p23
    $region11: #{tpu_custom_call.1} parent=1 // pred_check_branch
      %26 = sbr.rel (%p24) target = $region13
    $region12: #{tpu_custom_call.1} parent=1 // pred_region
      %vm27 = vcmask 58368
      %28 = vst.msk [vmem:[#allocation5] sm:$0x3] %vm27, 0.0
    $region13: #{tpu_custom_call.1} parent=1 // pred_fallthru
      _
    %v29 = vld [vmem:[#allocation5] sm:$0x3]
    %v30 = vld [vmem:[#allocation2] sm:$0xff]
    %v31 = vld [vmem:[#allocation2 + $0x8] sm:$0xff]
    %v32 = vld [vmem:[#allocation2 + $0x10] sm:$0xff]
    %v33 = vld [vmem:[#allocation2 + $0x18] sm:$0xff]
    %v34 = vadd.f32 %v30, %v31
    %35 = vadd.xlane.f32.xlu0 %v34
    %v36 = vpop.xlane.xlu0 %35
    %v37 = vadd.f32 %v32, %v33
    %38 = vadd.xlane.f32.xlu0 %v37
    %v39 = vpop.xlane.xlu0 %38
    %v42 = vlaneseq
    %v43 = vand.u32 %v42, 127
    %v44 = vlaneseq
    %v45 = vshrl.u32 %v44, 7
    %v46 = vsub.s32 %v43, %v45
    %v47 = vrot.slane %v36, %v46
    %v48 = vlaneseq
    %v49 = vshrl.u32 %v48, 7
    %v50 = vsub.s32 %v43, %v49
    %v51 = vrot.slane %v39, %v50
    %vm52 = vcmask 1041409
    %v53 = vsel %vm52, %v51, %v47
    %v55 = vadd.f32 %v29, %v53
    %vm56 = vcmask 58368
    %57 = vst.msk [vmem:[#allocation5] sm:$0x3] %vm56, %v55
    // Predicated region
    $region14: #{tpu_custom_call.1} parent=1 // pred_check
      _
    $region15: #{tpu_custom_call.1} parent=1 // pred_check_branch
      %59 = sbr.rel (0) target = $region17
    $region16: #{tpu_custom_call.1} parent=1 // pred_region
      %s61 = ssub.s32 32, 32
      %62 = vsyncadd [#allocation4], %s61
      %s64 = sshll.u32 [#allocation5], 4
      %s65 = int_to_ptr.vmem [resolvable:$true] %s64
      %67 = dma.vmem_to_hbm [thread:$0]  %s65, 32, %s1, [#allocation4]
    $region17: #{tpu_custom_call.1} parent=1 // pred_fallthru
      _
    // Predicated region
    $region18: #{tpu_custom_call.1} parent=1 // pred_check
      _
    $region19: #{tpu_custom_call.1} parent=1 // pred_check_branch
      %69 = sbr.rel (0) target = $region21
    $region20: #{tpu_custom_call.1} parent=1 // pred_region
      %70 = dma.done [#allocation4], 32
    $region21: #{tpu_custom_call.1} parent=1 // pred_fallthru
      _
    %71 = vsyncpa [#allocation3], 1
    %72 = vsyncpa [#allocation4], 1

</llo_original>
